<compile_context>
chip_gen: v7x
topology: tpu7x:2x2x1
jax: 0.10.0
libtpu: 0.0.40
codegen_flags: <defaults>
</compile_context>

<pallas_src>
import functools
import math

import jax
import jax.numpy as jnp
from jax.experimental import pallas as pl
from jax.experimental.pallas import tpu as pltpu


# ---------------------------------------------------------------------------
# Kernel
# ---------------------------------------------------------------------------
def _attention_head_kernel(x_ref, wqkv_ref, bqkv_ref, o_ref, *scratch,
                           seq_len, head_dim, kv_chunk, dot_dtype):
    """One grid step: Bt batch elements, fused QKV projection + attention.

    x_ref:    (Bt*S, H)   flattened rows of Bt batch elements (input dtype)
    wqkv_ref: (H, 3*D)    fused [Wq | Wk | Wv]
    bqkv_ref: (1, 3*D)    fused [bq | bk | bv]
    o_ref:    (Bt*S, D)
    scratch:  () for the dense path, or (k_scr, v_scr) of shape
              (n_chunks, Bt, kv_chunk, D) in dot_dtype for the chunked path.
    """
    rows = x_ref.shape[0]
    S, D = seq_len, head_dim
    Bt = rows // S

    # Fused QKV projection: one wide MXU matmul.  MXU operands in dot_dtype
    # (bf16 when the model dtype is f32); accumulation / bias / softmax in f32.
    x = x_ref[...].astype(dot_dtype)
    w = wqkv_ref[...].astype(dot_dtype)
    qkv = jnp.dot(x, w, preferred_element_type=jnp.float32)
    qkv = qkv + bqkv_ref[...].astype(jnp.float32)            # (Bt*S, 3D) f32

    # Scale q (S*D elements) rather than scores (S*S elements).
    # TODO(synk): when fusing heads at the MultiHeadAttention level, pad each
    # Q/K/V segment of W_qkv to a 128-lane boundary so these slices become
    # free lane-tile selects (negligible at D=8).
    scale = jnp.float32(1.0 / math.sqrt(D))
    q = (qkv[:, 0 * D:1 * D] * scale).reshape(Bt, S, D).astype(dot_dtype)
    k = qkv[:, 1 * D:2 * D].reshape(Bt, S, D).astype(dot_dtype)
    v = qkv[:, 2 * D:3 * D].reshape(Bt, S, D).astype(dot_dtype)

    if kv_chunk >= S:
        # Dense path (small S): one pass, (Bt, S, S) scores materialized.
        s = jnp.einsum('bqd,bkd->bqk', q, k,
                       preferred_element_type=jnp.float32)
        m = jnp.max(s, axis=-1, keepdims=True)
        p = jnp.exp(s - m)
        l = jnp.sum(p, axis=-1, keepdims=True)
        acc = jnp.einsum('bqk,bkd->bqd', p.astype(dot_dtype), v,
                         preferred_element_type=jnp.float32)
        # Renormalize the (S, D) output instead of the (S, S) weights; exact
        # reciprocal (EUP slot) keeps f32-level numerics.
        out = acc * pl.reciprocal(l, approx=False)
    else:
        # Flash-style online softmax over KV chunks: O(S * kv_chunk) VMEM.
        n_chunks = S // kv_chunk
        k_scr, v_scr = scratch
        # Stage K/V chunk-major (static unroll at trace time) so the online
        # softmax loop only needs dynamic indexing on the leading scratch axis.
        for c in range(n_chunks):
            k_scr[c] = k[:, c * kv_chunk:(c + 1) * kv_chunk, :]
            v_scr[c] = v[:, c * kv_chunk:(c + 1) * kv_chunk, :]

        def body(c, carry):
            m_i, l_i, acc_i = carry
            kc = k_scr[c]                                   # (Bt, kv_chunk, D)
            vc = v_scr[c]
            s = jnp.einsum('bqd,bkd->bqk', q, kc,
                           preferred_element_type=jnp.float32)
            m_new = jnp.maximum(m_i, jnp.max(s, axis=-1, keepdims=True))
            alpha = jnp.exp(m_i - m_new)
            p = jnp.exp(s - m_new)
            l_new = alpha * l_i + jnp.sum(p, axis=-1, keepdims=True)
            acc_new = alpha * acc_i + jnp.einsum(
                'bqk,bkd->bqd', p.astype(dot_dtype), vc,
                preferred_element_type=jnp.float32)
            return m_new, l_new, acc_new

        m0 = jnp.full((Bt, S, 1), -jnp.inf, dtype=jnp.float32)
        l0 = jnp.zeros((Bt, S, 1), dtype=jnp.float32)
        acc0 = jnp.zeros((Bt, S, D), dtype=jnp.float32)
        _, l_f, acc_f = jax.lax.fori_loop(0, n_chunks, body, (m0, l0, acc0))
        out = acc_f * pl.reciprocal(l_f, approx=False)

    # TODO(synk): with D=8 this store is lane-masked (8/128 lanes); the real
    # fix is head fusion at the MultiHeadAttention level so the output last
    # dim reaches >=128 lanes (lane-dense stores).
    o_ref[...] = out.reshape(rows, D).astype(o_ref.dtype)


# ---------------------------------------------------------------------------
# Tiling / budgeting helpers
# ---------------------------------------------------------------------------
def _vmem_capacity_bytes():
    """Per-TensorCore VMEM capacity; falls back to v7x's 64 MiB (smallest)."""
    try:
        cap = getattr(pltpu.get_tpu_info(), "vmem_capacity_bytes", None)
        if cap:
            return int(cap)
    except Exception:
        pass
    return 64 * 1024 * 1024


def _step_vmem_bytes(bt, S, H, D, in_itemsize, dot_itemsize, kv_chunk):
    """Rough per-grid-step VMEM footprint (pipelined blocks + intermediates)."""
    rows = bt * S
    f32 = 4
    sc = min(S, kv_chunk)
    total = 0
    total += 2 * rows * H * in_itemsize                  # x block (double-buffered)
    total += 2 * rows * D * in_itemsize                  # out block (double-buffered)
    total += 2 * (H + 1) * 3 * D * in_itemsize           # W_qkv + b_qkv
    total += rows * 3 * D * f32                          # qkv accumulator (f32)
    total += 3 * rows * D * dot_itemsize                 # q, k, v (dot dtype)
    total += 2 * bt * S * sc * f32                       # scores + exp (f32)
    total += bt * S * sc * dot_itemsize                  # weights cast for PV matmul
    total += rows * D * f32 + 4 * bt * S * f32           # acc, m, l
    if kv_chunk < S:
        total += 2 * bt * S * D * dot_itemsize           # K/V chunk-major scratch
    return total


def _pick_kv_chunk(S, kv_chunk=None):
    """KV chunk for the online-softmax path; kv_chunk == S means dense pass."""
    if kv_chunk is not None:
        if S % kv_chunk != 0:
            raise ValueError("kv_chunk must divide the sequence length")
        return kv_chunk
    if S <= 1024:        # (Bt, S, S) scores fit comfortably on every generation
        return S
    for c in (512, 256, 128):
        if S % c == 0:
            return c
    return S  # TODO(synk): ragged S needs a padded / BoundedSlice KV loop.


def _pick_batch_tile(B, S, H, D, in_itemsize, dot_itemsize, kv_chunk,
                     vmem_budget, max_rows=2048):
    """Largest VMEM-feasible batch tile, preferring >=2 grid steps (megacore)."""
    pack = {4: 8, 2: 16, 1: 32}.get(in_itemsize, 8)
    divisors = [d for d in range(1, B + 1) if B % d == 0]

    def legal(bt):
        # Non-full row blocks must respect sublane divisibility.
        return bt == B or (bt * S) % pack == 0

    def feasible(bt):
        if not legal(bt) or bt * S > max_rows:
            return False
        return _step_vmem_bytes(bt, S, H, D, in_itemsize, dot_itemsize,
                                kv_chunk) <= vmem_budget

    cand = [d for d in divisors if feasible(d)]
    if not cand:
        # Nothing fits the budget: take the smallest legal tile and rely on
        # the raised VMEM limit.  TODO(synk): also tile the Q axis for B == 1.
        return min(d for d in divisors if legal(d))
    multi = [d for d in cand if B // d >= 2]   # keep both v7x TensorCores busy
    return max(multi) if multi else max(cand)


# ---------------------------------------------------------------------------
# Wrapper
# ---------------------------------------------------------------------------
def attention_head(hidden_state, wq, wk, wv, bq, bk, bv, *,
                   prefer_bf16_mxu=True, kv_chunk=None):
    """Pallas forward for AttentionHead (mask=None semantics).

    hidden_state: (B, S, H); wq/wk/wv: (H, D) (PyTorch weight transposed);
    bq/bk/bv: (D,).
    """
    B, S, H = hidden_state.shape
    D = wq.shape[1]
    in_dtype = hidden_state.dtype
    use_bf16 = prefer_bf16_mxu and in_dtype == jnp.float32
    dot_dtype = jnp.bfloat16 if use_bf16 else in_dtype

    # Fuse the three projections once in the wrapper (single wide MXU matmul).
    wqkv = jnp.concatenate([wq, wk, wv], axis=1)               # (H, 3D)
    bqkv = jnp.concatenate([bq, bk, bv]).reshape(1, 3 * D)     # (1, 3D)

    kv_c = _pick_kv_chunk(S, kv_chunk)
    vmem_cap = _vmem_capacity_bytes()
    in_isz = jnp.dtype(in_dtype).itemsize
    dot_isz = jnp.dtype(dot_dtype).itemsize
    Bt = _pick_batch_tile(B, S, H, D, in_isz, dot_isz, kv_c,
                          vmem_budget=int(vmem_cap * 0.6))
    rows = Bt * S
    n_chunks = S // kv_c

    scratch_shapes = []
    if kv_c < S:
        scratch_shapes = [pltpu.VMEM((n_chunks, Bt, kv_c, D), dot_dtype)] * 2

    grid_spec = pltpu.PrefetchScalarGridSpec(
        num_scalar_prefetch=0,
        grid=(B // Bt,),
        in_specs=[
            pl.BlockSpec((rows, H), lambda i: (i, 0)),       # flattened rows
            pl.BlockSpec((H, 3 * D), lambda i: (0, 0)),      # fused W_qkv
            pl.BlockSpec((1, 3 * D), lambda i: (0, 0)),      # fused b_qkv
        ],
        out_specs=pl.BlockSpec((rows, D), lambda i: (i, 0)),
        scratch_shapes=scratch_shapes,
    )

    cost = pl.CostEstimate(
        flops=2 * B * S * H * 3 * D + 4 * B * S * S * D,
        transcendentals=B * S * S,
        bytes_accessed=(B * S * (H + D) + (H + 1) * 3 * D) * in_isz,
    )

    x2 = hidden_state.reshape(B * S, H)
    out2 = pl.pallas_call(
        functools.partial(_attention_head_kernel, seq_len=S, head_dim=D,
                          kv_chunk=kv_c, dot_dtype=dot_dtype),
        out_shape=jax.ShapeDtypeStruct((B * S, D), in_dtype),
        grid_spec=grid_spec,
        compiler_params=pltpu.CompilerParams(
            dimension_semantics=("parallel",),
            vmem_limit_bytes=int(vmem_cap * 0.75),
        ),
        cost_estimate=cost,
    )(x2, wqkv, bqkv)

    return out2.reshape(B, S, D)


# ---------------------------------------------------------------------------
# Pure-JAX reference (matches the PyTorch module, mask=None)
# ---------------------------------------------------------------------------
def _reference(hidden_state, wq, wk, wv, bq, bk, bv):
    q = hidden_state @ wq + bq
    k = hidden_state @ wk + bk
    v = hidden_state @ wv + bv
    scores = jnp.einsum("bqd,bkd->bqk", q, k) / math.sqrt(q.shape[-1])
    weights = jax.nn.softmax(scores, axis=-1)
    return jnp.einsum("bqk,bkd->bqd", weights, v)


if __name__ == "__main__":
    # Small shapes consistent with the module: hidden_size=32, num_heads=4.
    batch, seq, hidden_size, num_heads = 2, 8, 32, 4
    head_size = hidden_size // num_heads

    key = jax.random.PRNGKey(0)
    kx, kq, kk, kv_, kbq, kbk, kbv, kxl = jax.random.split(key, 8)

    # PyTorch Linear weight is (out, in); we store the transposed (in, out)
    # form used for x @ W.
    bound = 1.0 / math.sqrt(hidden_size)
    wq = jax.random.uniform(kq, (hidden_size, head_size), jnp.float32, -bound, bound)
    wk = jax.random.uniform(kk, (hidden_size, head_size), jnp.float32, -bound, bound)
    wv = jax.random.uniform(kv_, (hidden_size, head_size), jnp.float32, -bound, bound)
    bq = jax.random.uniform(kbq, (head_size,), jnp.float32, -bound, bound)
    bk = jax.random.uniform(kbk, (head_size,), jnp.float32, -bound, bound)
    bv = jax.random.uniform(kbv, (head_size,), jnp.float32, -bound, bound)

    x = jax.random.normal(kx, (batch, seq, hidden_size), dtype=jnp.float32)
    ref = _reference(x, wq, wk, wv, bq, bk, bv)

    # 1) f32 MXU operands, dense softmax path (grid=2 -> both v7x TCs busy).
    out_f32 = jax.block_until_ready(
        attention_head(x, wq, wk, wv, bq, bk, bv, prefer_bf16_mxu=False))
    assert out_f32.shape == (batch, seq, head_size)
    assert jnp.allclose(out_f32, ref, atol=1e-3, rtol=1e-3), "f32 path mismatch"

    # 2) default path: bf16 MXU operands (native MXU path), f32 softmax.
    out_bf16 = jax.block_until_ready(attention_head(x, wq, wk, wv, bq, bk, bv))
    assert jnp.allclose(out_bf16, ref, atol=5e-2, rtol=5e-2), "bf16 path mismatch"

    # 3) flash-style KV-chunked online-softmax path (chunking forced on).
    seq_long = 256
    xl = jax.random.normal(kxl, (batch, seq_long, hidden_size), dtype=jnp.float32)
    ref_l = _reference(xl, wq, wk, wv, bq, bk, bv)
    out_l = jax.block_until_ready(
        attention_head(xl, wq, wk, wv, bq, bk, bv,
                       prefer_bf16_mxu=False, kv_chunk=128))
    assert jnp.allclose(out_l, ref_l, atol=1e-3, rtol=1e-3), "kv-chunked path mismatch"

    print("KERNEL_OK")
</pallas_src>

<mosaic_0001>
module attributes {stable_mosaic.version = 11 : i64} {
  func.func @_attention_head_kernel(%arg0: i32, %arg1: memref<8x32xf32, #tpu.memory_space<vmem>>, %arg2: memref<32x24xf32, #tpu.memory_space<vmem>>, %arg3: memref<1x24xf32, #tpu.memory_space<vmem>>, %arg4: memref<8x8xf32, #tpu.memory_space<vmem>>) attributes {dimension_semantics = [#tpu.dimension_semantics<parallel>], iteration_bounds = array<i64: 2>, scalar_prefetch = 0 : i64, scratch_operands = 0 : i64, tpu.core_type = #tpu.core_type<tc>, window_params = [{transform_indices = @transform_0, window_bounds = array<i64: 8, 32>}, {pipeline_mode = #tpu.pipeline_mode<synchronous>, transform_indices = @transform_1, window_bounds = array<i64: 32, 24>}, {pipeline_mode = #tpu.pipeline_mode<synchronous>, transform_indices = @transform_2, window_bounds = array<i64: 1, 24>}, {transform_indices = @transform_3, window_bounds = array<i64: 8, 8>}]} {
    %c0 = arith.constant 0 : index
    %c0_0 = arith.constant 0 : index
    %0 = vector.load %arg1[%c0, %c0_0] : memref<8x32xf32, #tpu.memory_space<vmem>>, vector<8x32xf32>
    %c0_1 = arith.constant 0 : index
    %c0_2 = arith.constant 0 : index
    %1 = vector.load %arg2[%c0_1, %c0_2] : memref<32x24xf32, #tpu.memory_space<vmem>>, vector<32x24xf32>
    %cst = arith.constant dense<0.000000e+00> : vector<8x24xf32>
    %2 = tpu.matmul %0, %1, %cst {dimension_numbers = #tpu.dot_dimension_numbers<[1], [0], [0], [1], [0, 0, 1, 1], [], []>} : vector<8x32xf32>, vector<32x24xf32>, vector<8x24xf32> -> vector<8x24xf32>
    %c0_3 = arith.constant 0 : index
    %c0_4 = arith.constant 0 : index
    %3 = vector.load %arg3[%c0_3, %c0_4] : memref<1x24xf32, #tpu.memory_space<vmem>>, vector<1x24xf32>
    %4 = vector.broadcast %3 : vector<1x24xf32> to vector<8x24xf32>
    %5 = arith.addf %2, %4 : vector<8x24xf32>
    %6 = vector.extract_strided_slice %5 {offsets = [0, 0], sizes = [8, 8], strides = [1, 1]} : vector<8x24xf32> to vector<8x8xf32>
    %cst_5 = arith.constant 0.353553385 : f32
    %7 = vector.broadcast %cst_5 : f32 to vector<8x8xf32>
    %8 = arith.mulf %6, %7 : vector<8x8xf32>
    %9 = vector.shape_cast %8 : vector<8x8xf32> to vector<1x8x8xf32>
    %10 = vector.extract_strided_slice %5 {offsets = [0, 8], sizes = [8, 8], strides = [1, 1]} : vector<8x24xf32> to vector<8x8xf32>
    %11 = vector.shape_cast %10 : vector<8x8xf32> to vector<1x8x8xf32>
    %12 = vector.extract_strided_slice %5 {offsets = [0, 16], sizes = [8, 8], strides = [1, 1]} : vector<8x24xf32> to vector<8x8xf32>
    %13 = vector.shape_cast %12 : vector<8x8xf32> to vector<1x8x8xf32>
    "tpu.trace_start"() <{level = 10 : i32, message = "bqd,bkd->bqk"}> : () -> ()
    %cst_6 = arith.constant dense<0.000000e+00> : vector<1x8x8xf32>
    %14 = tpu.matmul %9, %11, %cst_6 {dimension_numbers = #tpu.dot_dimension_numbers<[2], [2], [1], [1], [0, 0, 0, 1, 1, 1], [0], [0]>} : vector<1x8x8xf32>, vector<1x8x8xf32>, vector<1x8x8xf32> -> vector<1x8x8xf32>
    "tpu.trace_stop"() : () -> ()
    %cst_7 = arith.constant dense<0xFF800000> : vector<1x8xf32>
    %15 = vector.multi_reduction <maximumf>, %14, %cst_7 [2] : vector<1x8x8xf32> to vector<1x8xf32>
    %16 = vector.shape_cast %15 : vector<1x8xf32> to vector<1x8x1xf32>
    %17 = vector.broadcast %16 : vector<1x8x1xf32> to vector<1x8x8xf32>
    %18 = arith.subf %14, %17 : vector<1x8x8xf32>
    %19 = math.exp %18 : vector<1x8x8xf32>
    %cst_8 = arith.constant dense<0.000000e+00> : vector<1x8xf32>
    %20 = vector.multi_reduction <add>, %19, %cst_8 [2] : vector<1x8x8xf32> to vector<1x8xf32>
    %21 = vector.shape_cast %20 : vector<1x8xf32> to vector<1x8x1xf32>
    "tpu.trace_start"() <{level = 10 : i32, message = "bqk,bkd->bqd"}> : () -> ()
    %cst_9 = arith.constant dense<0.000000e+00> : vector<1x8x8xf32>
    %22 = tpu.matmul %19, %13, %cst_9 {dimension_numbers = #tpu.dot_dimension_numbers<[2], [1], [1], [2], [0, 0, 0, 1, 1, 2], [0], [0]>} : vector<1x8x8xf32>, vector<1x8x8xf32>, vector<1x8x8xf32> -> vector<1x8x8xf32>
    "tpu.trace_stop"() : () -> ()
    %23 = tpu.reciprocal %21 : vector<1x8x1xf32> -> vector<1x8x1xf32>
    %24 = vector.broadcast %23 : vector<1x8x1xf32> to vector<1x8x8xf32>
    %25 = arith.mulf %22, %24 : vector<1x8x8xf32>
    %26 = vector.shape_cast %25 : vector<1x8x8xf32> to vector<8x8xf32>
    %c0_10 = arith.constant 0 : index
    %c0_11 = arith.constant 0 : index
    %27 = vector.load %arg4[%c0_10, %c0_11] : memref<8x8xf32, #tpu.memory_space<vmem>>, vector<8x8xf32>
    tpu.vector_store %arg4[%c0_10, %c0_11], %26 {strides = array<i32>} : memref<8x8xf32, #tpu.memory_space<vmem>>, vector<8x8xf32>,
    return
  }
  func.func @transform_0(%arg0: i32) -> (i32, i32) {
    %c0_i32 = arith.constant 0 : i32
    %c0_i32_0 = arith.constant 0 : i32
    return %arg0, %c0_i32 : i32, i32
  }
  func.func @transform_1(%arg0: i32) -> (i32, i32) {
    %c0_i32 = arith.constant 0 : i32
    %c0_i32_0 = arith.constant 0 : i32
    %c0_i32_1 = arith.constant 0 : i32
    return %c0_i32, %c0_i32_0 : i32, i32
  }
  func.func @transform_2(%arg0: i32) -> (i32, i32) {
    %c0_i32 = arith.constant 0 : i32
    %c0_i32_0 = arith.constant 0 : i32
    %c0_i32_1 = arith.constant 0 : i32
    return %c0_i32, %c0_i32_0 : i32, i32
  }
  func.func @transform_3(%arg0: i32) -> (i32, i32) {
    %c0_i32 = arith.constant 0 : i32
    %c0_i32_0 = arith.constant 0 : i32
    return %arg0, %c0_i32 : i32, i32
  }
}

</mosaic_0001>

<llo_original>
// kernel: tpu_custom_call.1
$region0: #{tpu_custom_call.1}
  #allocation0 [shape = 'u32[]', space=smem, size = 0x4, offset = 0x4, fixed_abs, tag = 'smem constant byte address 0x4 - core index']
  #allocation1 [shape = 'u32[144,128]{1,0:T(1,128)}', space=vmem, size = 0x12000, scoped, tag = 'internal scratch']
  %s0 = inlined_call_operand.vmem [shape: f32[16,32], index: 0, kind: input, shape index: {}]
  %s1 = inlined_call_operand.vmem [shape: f32[32,24], index: 1, kind: input, shape index: {}]
  %s2 = inlined_call_operand.vmem [shape: f32[1,24], index: 2, kind: input, shape index: {}]
  %s3 = inlined_call_operand.vmem [shape: f32[16,8], index: 3, kind: output, shape index: {}]
  %s4 = sld [smem:[#allocation0]]
  $region45: #{tpu_custom_call.1} parent=0
    _
  %s6 = ssub.s32 1, %s4
  %s7 = scalar_select 0, %s6, %s4
  loop: start=0, step=1, limit=4
  $region2: #{tpu_custom_call.1} parent=0 // loop_pre_header
    _
  $region3: #{tpu_custom_call.1} parent=0 // loop_header
    %s9 = sphi 0, %s13
    %p10 = scmp.ge.s32.totalorder %s9, 4
    %s19 = sphi 0, %s21
    %s22 = sphi 0, %s19
    %s23 = sphi 0, %s22
    %s39 = sphi 0, %s23
    %s43 = sphi 0, %s43
    %s45 = sphi 0, %s43
    %s46 = sphi 0, %s45
    %s60 = sphi 0, %s46
    %s64 = sphi 0, %s64
    %s66 = sphi 0, %s64
    %s67 = sphi 0, %s66
    %s81 = sphi 0, %s67
    %s87 = sphi 0, %s89
    %s90 = sphi 0, %s87
    %s91 = sphi 0, %s90
    %s107 = sphi 0, %s91
  $region4: #{tpu_custom_call.1} parent=0 // loop_header_branch
    %12 = sbr.rel (%p10) target = $region8
  $region5: #{tpu_custom_call.1} parent=0 // loop_body
    %s14 = ssub.s32 %s9, 1
    %s15 = ssub.s32 %s9, 2
    %s16 = sadd.s32 %s9, 1
    %s17 = ssub.s32 %s9, %s16
    %p18 = scmp.eq.s32.totalorder %s17, 0
    %s20 = sadd.s32 %s19, 1
    %s21 = scalar_select %p18, %s19, %s20
    %p24 = pneg %p18
    %p25 = scmp.eq.s32.totalorder %s9, 1
    %p26 = por %p24, %p25
    %p27 = scmp.ne.s32.totalorder %s19, %s22
    %p28 = scmp.eq.s32.totalorder %s9, 0
    %p29 = por %p27, %p28
    %p30 = scmp.ne.s32.totalorder %s19, %s22
    %p31 = scmp.eq.s32.totalorder %s14, 1
    %p32 = por %p30, %p31
    %p33 = scmp.ne.s32.totalorder %s22, %s23
    %p34 = scmp.eq.s32.totalorder %s14, 0
    %p35 = por %p33, %p34
    %p36 = scmp.ne.s32.totalorder %s22, %s23
    %p37 = scmp.eq.s32.totalorder %s15, 1
    %p38 = por %p36, %p37
    %p40 = scmp.ne.s32.totalorder %s23, %s39
    %p41 = scmp.eq.s32.totalorder %s15, 0
    %p42 = por %p40, %p41
    %s44 = sadd.s32 %s43, 1
    %p47 = scmp.eq.s32.totalorder %s9, 1
    %p48 = scmp.ne.s32.totalorder %s43, %s45
    %p49 = scmp.eq.s32.totalorder %s9, 0
    %p50 = por %p48, %p49
    %p51 = scmp.ne.s32.totalorder %s43, %s45
    %p52 = scmp.eq.s32.totalorder %s14, 1
    %p53 = por %p51, %p52
    %p54 = scmp.ne.s32.totalorder %s45, %s46
    %p55 = scmp.eq.s32.totalorder %s14, 0
    %p56 = por %p54, %p55
    %p57 = scmp.ne.s32.totalorder %s45, %s46
    %p58 = scmp.eq.s32.totalorder %s15, 1
    %p59 = por %p57, %p58
    %p61 = scmp.ne.s32.totalorder %s46, %s60
    %p62 = scmp.eq.s32.totalorder %s15, 0
    %p63 = por %p61, %p62
    %s65 = sadd.s32 %s64, 1
    %p68 = scmp.eq.s32.totalorder %s9, 1
    %p69 = scmp.ne.s32.totalorder %s64, %s66
    %p70 = scmp.eq.s32.totalorder %s9, 0
    %p71 = por %p69, %p70
    %p72 = scmp.ne.s32.totalorder %s64, %s66
    %p73 = scmp.eq.s32.totalorder %s14, 1
    %p74 = por %p72, %p73
    %p75 = scmp.ne.s32.totalorder %s66, %s67
    %p76 = scmp.eq.s32.totalorder %s14, 0
    %p77 = por %p75, %p76
    %p78 = scmp.ne.s32.totalorder %s66, %s67
    %p79 = scmp.eq.s32.totalorder %s15, 1
    %p80 = por %p78, %p79
    %p82 = scmp.ne.s32.totalorder %s67, %s81
    %p83 = scmp.eq.s32.totalorder %s15, 0
    %p84 = por %p82, %p83
    %s85 = ssub.s32 %s9, %s16
    %p86 = scmp.eq.s32.totalorder %s85, 0
    %s88 = sadd.s32 %s87, 1
    %s89 = scalar_select %p86, %s87, %s88
    %p92 = pneg %p86
    %p93 = scmp.eq.s32.totalorder %s9, 1
    %p94 = por %p92, %p93
    %p95 = scmp.ne.s32.totalorder %s87, %s90
    %p96 = scmp.eq.s32.totalorder %s9, 0
    %p97 = por %p95, %p96
    %p98 = scmp.ne.s32.totalorder %s87, %s90
    %p99 = scmp.eq.s32.totalorder %s14, 1
    %p100 = por %p98, %p99
    %p101 = scmp.ne.s32.totalorder %s90, %s91
    %p102 = scmp.eq.s32.totalorder %s14, 0
    %p103 = por %p101, %p102
    %p104 = scmp.ne.s32.totalorder %s90, %s91
    %p105 = scmp.eq.s32.totalorder %s15, 1
    %p106 = por %p104, %p105
    %p108 = scmp.ne.s32.totalorder %s91, %s107
    %p109 = scmp.eq.s32.totalorder %s15, 0
    %p110 = por %p108, %p109
    %p111 = scmp.le.s32.totalorder 1, %s9
    %p112 = scmp.lt.s32.totalorder %s9, 3
    %p113 = pnand %p111, %p112
    %p114 = pneg %p113
    // Predicated region
    $region9: #{tpu_custom_call.1} parent=5 // pred_check
      _
    $region10: #{tpu_custom_call.1} parent=5 // pred_check_branch
      %116 = sbr.rel (%p113) target = $region12
    $region11: #{tpu_custom_call.1} parent=5 // pred_region
      %s117 = ssub.s32 %s9, 1
      // Predicated region
      $region13: #{tpu_custom_call.1} parent=11 // pred_check
        %p118 = pneg %p56
      $region14: #{tpu_custom_call.1} parent=11 // pred_check_branch
        %120 = sbr.rel (%p118) target = $region16
      $region15: #{tpu_custom_call.1} parent=11 // pred_region
        _
      $region16: #{tpu_custom_call.1} parent=11 // pred_fallthru
        _
      // Predicated region
      $region17: #{tpu_custom_call.1} parent=11 // pred_check
        %p121 = pneg %p77
      $region18: #{tpu_custom_call.1} parent=11 // pred_check_branch
        %123 = sbr.rel (%p121) target = $region20
      $region19: #{tpu_custom_call.1} parent=11 // pred_region
        _
      $region20: #{tpu_custom_call.1} parent=11 // pred_fallthru
        _
    $region12: #{tpu_custom_call.1} parent=5 // pred_fallthru
      _
    %p124 = scmp.lt.s32.totalorder %s9, 2
    // Predicated region
    $region21: #{tpu_custom_call.1} parent=5 // pred_check
      %p125 = pneg %p124
    $region22: #{tpu_custom_call.1} parent=5 // pred_check_branch
      %127 = sbr.rel (%p125) target = $region24
    $region23: #{tpu_custom_call.1} parent=5 // pred_region
      // Predicated region
      $region25: #{tpu_custom_call.1} parent=23 // pred_check
        %p128 = pneg %p29
      $region26: #{tpu_custom_call.1} parent=23 // pred_check_branch
        %130 = sbr.rel (%p128) target = $region28
      $region27: #{tpu_custom_call.1} parent=23 // pred_region
        %p131 = scmp.lt.s32.totalorder %s9, 1
        %s132 = scalar_select %p131, %s9, 1
        %s133 = smul.addr %s132, 8
        %s134 = scalar_lea.vmem %s0, %s133
      $region28: #{tpu_custom_call.1} parent=23 // pred_fallthru
        _
    $region24: #{tpu_custom_call.1} parent=5 // pred_fallthru
      _
    %p135 = scmp.le.s32.totalorder 1, %s9
    %p136 = scmp.lt.s32.totalorder %s9, 3
    %p137 = pnand %p135, %p136
    %p138 = pneg %p137
    // Predicated region
    $region29: #{tpu_custom_call.1} parent=5 // pred_check
      _
    $region30: #{tpu_custom_call.1} parent=5 // pred_check_branch
      %140 = sbr.rel (%p137) target = $region32
    $region31: #{tpu_custom_call.1} parent=5 // pred_region
      %s141 = ssub.s32 %s9, 1
      %p142 = scmp.lt.s32.totalorder %s14, 1
      %s143 = scalar_select %p142, %s14, 1
      %s144 = smul.addr %s143, 8
      %s145 = scalar_lea.vmem %s0, %s144
      %p146 = pneg %p35
      %p147 = pneg %p32
      %p148 = pneg %p56
      %p149 = pneg %p53
      %p150 = pneg %p77
      %p151 = pneg %p74
      %p152 = pneg %p103
      %p153 = pneg %p100
      %p154 = scmp.lt.s32.totalorder %s14, 1
      %s155 = scalar_select %p154, %s14, 1
      %s156 = smul.addr %s155, 8
      %s157 = scalar_lea.vmem %s3, %s156
      %p158 = scmp.lt.s32.totalorder %s14, 1
      %s159 = scalar_select %p158, %s14, 1
      %s160 = smul.addr %s159, 8
      %s161 = scalar_lea.vmem %s0, %s160
      %p162 = scmp.lt.s32.totalorder %s14, 1
      %s163 = scalar_select %p162, %s14, 1
      %s164 = smul.addr %s163, 8
      %s165 = scalar_lea.vmem %s3, %s164
      %v166 = vld [vmem:[%s161] sm:$0xff]
      %v167 = vld [vmem:[%s1] sm:$0xff]
      %v168 = vld [vmem:[%s1 + $0x8] sm:$0xff]
      %v169 = vld [vmem:[%s1 + $0x10] sm:$0xff]
      %v170 = vld [vmem:[%s1 + $0x18] sm:$0xff]
      %v171 = vld [vmem:[%s2] sm:$0x1]
      %v173 = vlaneseq
      %v174 = vshrl.u32 %v173, 7
      %v175 = vsub.s32 0, %v174
      %v176 = vrot.slane %v171, %v175
      %vm178 = vcmask 261120
      %v180 = vsel %vm178, %v166, 0
      %182 = vmatprep.subr.mxu0 0.0
      %183 = vmatpush1.msra.mxu0 %v167
      %184 = vmatprep.subr.mxu0 0.0
      %185 = vmatpush1.msra.mxu0 %v168
      %186 = vmatprep.subr.mxu0 0.0
      %187 = vmatpush1.msra.mxu0 %v169
      %188 = vmatprep.subr.mxu0 0.0
      %189 = vmatpush1.msra.mxu0 %v170
      %190 = vmatprep.subr.mxu0 0.0
      %191 = vmatpush1.msra.mxu0 0.0
      %192 = vmatprep.subr.mxu0 0.0
      %193 = vmatpush1.msra.mxu0 0.0
      %194 = vmatprep.subr.mxu0 0.0
      %195 = vmatpush1.msra.mxu0 0.0
      %196 = vmatprep.subr.mxu0 0.0
      %197 = vmatpush1.msra.mxu0 0.0
      %198 = vmatprep.subr.mxu0 0.0
      %199 = vmatpush1.msra.mxu0 0.0
      %200 = vmatprep.subr.mxu0 0.0
      %201 = vmatpush1.msra.mxu0 0.0
      %202 = vmatprep.subr.mxu0 0.0
      %203 = vmatpush1.msra.mxu0 0.0
      %204 = vmatprep.subr.mxu0 0.0
      %205 = vmatpush1.msra.mxu0 0.0
      %206 = vmatprep.subr.mxu0 0.0
      %207 = vmatpush1.msra.mxu0 0.0
      %208 = vmatprep.subr.mxu0 0.0
      %209 = vmatpush1.msra.mxu0 0.0
      %210 = vmatprep.subr.mxu0 0.0
      %211 = vmatpush1.msra.mxu0 0.0
      %212 = vmatprep.subr.mxu0 0.0
      %213 = vmatpush1.msra.mxu0 0.0
      %214 = vmatprep.subr.mxu0 0.0
      %215 = vmatpush1.msra.mxu0 0.0
      %216 = vmatprep.subr.mxu0 0.0
      %217 = vmatpush1.msra.mxu0 0.0
      %218 = vmatprep.subr.mxu0 0.0
      %219 = vmatpush1.msra.mxu0 0.0
      %220 = vmatprep.subr.mxu0 0.0
      %221 = vmatpush1.msra.mxu0 0.0
      %222 = vmatprep.subr.mxu0 0.0
      %223 = vmatpush1.msra.mxu0 0.0
      %224 = vmatprep.subr.mxu0 0.0
      %225 = vmatpush1.msra.mxu0 0.0
      %226 = vmatprep.subr.mxu0 0.0
      %227 = vmatpush1.msra.mxu0 0.0
      %228 = vmatprep.subr.mxu0 0.0
      %229 = vmatpush1.msra.mxu0 0.0
      %230 = vmatprep.subr.mxu0 0.0
      %231 = vmatpush1.msra.mxu0 0.0
      %232 = vmatprep.subr.mxu0 0.0
      %233 = vmatpush1.msra.mxu0 0.0
      %234 = vmatprep.subr.mxu0 0.0
      %235 = vmatpush1.msra.mxu0 0.0
      %236 = vmatprep.subr.mxu0 0.0
      %237 = vmatpush1.msra.mxu0 0.0
      %238 = vmatprep.subr.mxu0 0.0
      %239 = vmatpush1.msra.mxu0 0.0
      %240 = vmatprep.subr.mxu0 0.0
      %241 = vmatpush1.msra.mxu0 0.0
      %242 = vmatprep.subr.mxu0 0.0
      %243 = vmatpush1.msra.mxu0 0.0
      %244 = vmatprep.subr.mxu0 0.0
      %245 = vmatpush1.msra.mxu0 0.0
      %246 = vmatprep.mubr.f32.mxu0 0.0
      %247 = vmatmul.mubr.f32.gmra.mrb[0].mxu0 %v180
      %v248 = vpop.f32.mrb[0].mxu0
      %v249 = vadd.f32 %v176, %v248
      %v250 = vpop.f32.mrb[0].mxu0
      %251 = vdwg.mxu0
      %v252 = vmul.f32 %v249, 0.35355338
      %254 = vrot.lane.b32.xlu0 %v249, 120
      %v255 = vpop.permute.xlu0 %254
      %vm256 = vcmask 64512
      %v258 = vsel %vm256, %v252, 0
      %v260 = vsel %vm256, %v255, 0
      %262 = vmatprep.subr.mxu0 0.0
      %263 = vmatpush1.xpose.msra.mxu0 %v260
      %264 = vmatprep.subr.mxu0 0.0
      %265 = vmatpush1.xpose.msra.mxu0 0.0
      %266 = vmatprep.subr.mxu0 0.0
      %267 = vmatpush1.xpose.msra.mxu0 0.0
      %268 = vmatprep.subr.mxu0 0.0
      %269 = vmatpush1.xpose.msra.mxu0 0.0
      %270 = vmatprep.subr.mxu0 0.0
      %271 = vmatpush1.xpose.msra.mxu0 0.0
      %272 = vmatprep.subr.mxu0 0.0
      %273 = vmatpush1.xpose.msra.mxu0 0.0
      %274 = vmatprep.subr.mxu0 0.0
      %275 = vmatpush1.xpose.msra.mxu0 0.0
      %276 = vmatprep.subr.mxu0 0.0
      %277 = vmatpush1.xpose.msra.mxu0 0.0
      %278 = vmatprep.subr.mxu0 0.0
      %279 = vmatpush1.xpose.msra.mxu0 0.0
      %280 = vmatprep.subr.mxu0 0.0
      %281 = vmatpush1.xpose.msra.mxu0 0.0
      %282 = vmatprep.subr.mxu0 0.0
      %283 = vmatpush1.xpose.msra.mxu0 0.0
      %284 = vmatprep.subr.mxu0 0.0
      %285 = vmatpush1.xpose.msra.mxu0 0.0
      %286 = vmatprep.subr.mxu0 0.0
      %287 = vmatpush1.xpose.msra.mxu0 0.0
      %288 = vmatprep.subr.mxu0 0.0
      %289 = vmatpush1.xpose.msra.mxu0 0.0
      %290 = vmatprep.subr.mxu0 0.0
      %291 = vmatpush1.xpose.msra.mxu0 0.0
      %292 = vmatprep.subr.mxu0 0.0
      %293 = vmatpush1.xpose.msra.mxu0 0.0
      %294 = vmatprep.subr.mxu0 0.0
      %295 = vmatpush1.xpose.msra.mxu0 0.0
      %296 = vmatprep.subr.mxu0 0.0
      %297 = vmatpush1.xpose.msra.mxu0 0.0
      %298 = vmatprep.subr.mxu0 0.0
      %299 = vmatpush1.xpose.msra.mxu0 0.0
      %300 = vmatprep.subr.mxu0 0.0
      %301 = vmatpush1.xpose.msra.mxu0 0.0
      %302 = vmatprep.subr.mxu0 0.0
      %303 = vmatpush1.xpose.msra.mxu0 0.0
      %304 = vmatprep.subr.mxu0 0.0
      %305 = vmatpush1.xpose.msra.mxu0 0.0
      %306 = vmatprep.subr.mxu0 0.0
      %307 = vmatpush1.xpose.msra.mxu0 0.0
      %308 = vmatprep.subr.mxu0 0.0
      %309 = vmatpush1.xpose.msra.mxu0 0.0
      %310 = vmatprep.subr.mxu0 0.0
      %311 = vmatpush1.xpose.msra.mxu0 0.0
      %312 = vmatprep.subr.mxu0 0.0
      %313 = vmatpush1.xpose.msra.mxu0 0.0
      %314 = vmatprep.subr.mxu0 0.0
      %315 = vmatpush1.xpose.msra.mxu0 0.0
      %316 = vmatprep.subr.mxu0 0.0
      %317 = vmatpush1.xpose.msra.mxu0 0.0
      %318 = vmatprep.subr.mxu0 0.0
      %319 = vmatpush1.xpose.msra.mxu0 0.0
      %320 = vmatprep.subr.mxu0 0.0
      %321 = vmatpush1.xpose.msra.mxu0 0.0
      %322 = vmatprep.subr.mxu0 0.0
      %323 = vmatpush1.xpose.msra.mxu0 0.0
      %324 = vmatprep.subr.mxu0 0.0
      %325 = vmatpush1.xpose.msra.mxu0 0.0
      %326 = vmatprep.mubr.f32.mxu0 0.0
      %327 = vmatmul.mubr.f32.gmra.mrb[0].mxu0 %v258
      %v328 = vpop.f32.mrb[0].mxu0
      %v329 = vadd.f32 0.0, %v328
      %v330 = vpop.f32.mrb[0].mxu0
      %331 = vdwg.mxu0
      %v332 = vsel %vm256, %v329, -inf
      %333 = vmax.xlane.f32.xlu0 %v332
      %v334 = vpop.xlane.xlu0 %333
      %v335 = vsub.f32 %v329, %v334
      %v336 = vmul.f32 %v335, 1.442695
      %v337 = vpow.pop %v336
      %v338 = vsel %vm256, %v337, 0.0
      %339 = vadd.xlane.f32.xlu0 %v338
      %v340 = vpop.xlane.xlu0 %339
      %341 = vrot.lane.b32.xlu0 %v249, 112
      %v342 = vpop.permute.xlu0 %341
      %v345 = vsel %vm256, %v337, 0
      %347 = vmatprep.subr.mxu0 0.0
      %348 = vmatpush1.msra.mxu0 %v342
      %349 = vmatprep.subr.mxu0 0.0
      %350 = vmatpush1.msra.mxu0 0.0
      %351 = vmatprep.subr.mxu0 0.0
      %352 = vmatpush1.msra.mxu0 0.0
      %353 = vmatprep.subr.mxu0 0.0
      %354 = vmatpush1.msra.mxu0 0.0
      %355 = vmatprep.subr.mxu0 0.0
      %356 = vmatpush1.msra.mxu0 0.0
      %357 = vmatprep.subr.mxu0 0.0
      %358 = vmatpush1.msra.mxu0 0.0
      %359 = vmatprep.subr.mxu0 0.0
      %360 = vmatpush1.msra.mxu0 0.0
      %361 = vmatprep.subr.mxu0 0.0
      %362 = vmatpush1.msra.mxu0 0.0
      %363 = vmatprep.subr.mxu0 0.0
      %364 = vmatpush1.msra.mxu0 0.0
      %365 = vmatprep.subr.mxu0 0.0
      %366 = vmatpush1.msra.mxu0 0.0
      %367 = vmatprep.subr.mxu0 0.0
      %368 = vmatpush1.msra.mxu0 0.0
      %369 = vmatprep.subr.mxu0 0.0
      %370 = vmatpush1.msra.mxu0 0.0
      %371 = vmatprep.subr.mxu0 0.0
      %372 = vmatpush1.msra.mxu0 0.0
      %373 = vmatprep.subr.mxu0 0.0
      %374 = vmatpush1.msra.mxu0 0.0
      %375 = vmatprep.subr.mxu0 0.0
      %376 = vmatpush1.msra.mxu0 0.0
      %377 = vmatprep.subr.mxu0 0.0
      %378 = vmatpush1.msra.mxu0 0.0
      %379 = vmatprep.subr.mxu0 0.0
      %380 = vmatpush1.msra.mxu0 0.0
      %381 = vmatprep.subr.mxu0 0.0
      %382 = vmatpush1.msra.mxu0 0.0
      %383 = vmatprep.subr.mxu0 0.0
      %384 = vmatpush1.msra.mxu0 0.0
      %385 = vmatprep.subr.mxu0 0.0
      %386 = vmatpush1.msra.mxu0 0.0
      %387 = vmatprep.subr.mxu0 0.0
      %388 = vmatpush1.msra.mxu0 0.0
      %389 = vmatprep.subr.mxu0 0.0
      %390 = vmatpush1.msra.mxu0 0.0
      %391 = vmatprep.subr.mxu0 0.0
      %392 = vmatpush1.msra.mxu0 0.0
      %393 = vmatprep.subr.mxu0 0.0
      %394 = vmatpush1.msra.mxu0 0.0
      %395 = vmatprep.subr.mxu0 0.0
      %396 = vmatpush1.msra.mxu0 0.0
      %397 = vmatprep.subr.mxu0 0.0
      %398 = vmatpush1.msra.mxu0 0.0
      %399 = vmatprep.subr.mxu0 0.0
      %400 = vmatpush1.msra.mxu0 0.0
      %401 = vmatprep.subr.mxu0 0.0
      %402 = vmatpush1.msra.mxu0 0.0
      %403 = vmatprep.subr.mxu0 0.0
      %404 = vmatpush1.msra.mxu0 0.0
      %405 = vmatprep.subr.mxu0 0.0
      %406 = vmatpush1.msra.mxu0 0.0
      %407 = vmatprep.subr.mxu0 0.0
      %408 = vmatpush1.msra.mxu0 0.0
      %409 = vmatprep.subr.mxu0 0.0
      %410 = vmatpush1.msra.mxu0 0.0
      %411 = vmatprep.mubr.f32.mxu0 0.0
      %412 = vmatmul.mubr.f32.gmra.mrb[0].mxu0 %v345
      %v413 = vpop.f32.mrb[0].mxu0
      %v414 = vadd.f32 0.0, %v413
      %v415 = vpop.f32.mrb[0].mxu0
      %416 = vdwg.mxu0
      %v417 = vrcp.pop %v340
      %v418 = vmul.f32 %v414, %v417
      %419 = vst.msk [vmem:[%s165] sm:$0xff] %vm256, %v418
      %p420 = scmp.lt.s32.totalorder %s14, 1
      %s421 = scalar_select %p420, %s14, 1
      %s422 = smul.addr %s421, 8
      %s423 = scalar_lea.vmem %s3, %s422
      // Predicated region
      $region33: #{tpu_custom_call.1} parent=31 // pred_check
        %p424 = pneg %p100
      $region34: #{tpu_custom_call.1} parent=31 // pred_check_branch
        %426 = sbr.rel (%p424) target = $region36
      $region35: #{tpu_custom_call.1} parent=31 // pred_region
        _
      $region36: #{tpu_custom_call.1} parent=31 // pred_fallthru
        _
    $region32: #{tpu_custom_call.1} parent=5 // pred_fallthru
      _
    %p427 = scmp.le.s32.totalorder 2, %s9
    // Predicated region
    $region37: #{tpu_custom_call.1} parent=5 // pred_check
      %p428 = pneg %p427
    $region38: #{tpu_custom_call.1} parent=5 // pred_check_branch
      %430 = sbr.rel (%p428) target = $region40
    $region39: #{tpu_custom_call.1} parent=5 // pred_region
      %s431 = ssub.s32 %s9, 2
      // Predicated region
      $region41: #{tpu_custom_call.1} parent=39 // pred_check
        %p432 = pneg %p106
      $region42: #{tpu_custom_call.1} parent=39 // pred_check_branch
        %434 = sbr.rel (%p432) target = $region44
      $region43: #{tpu_custom_call.1} parent=39 // pred_region
        %p435 = scmp.lt.s32.totalorder %s15, 1
        %s436 = scalar_select %p435, %s15, 1
        %s437 = smul.addr %s436, 8
        %s438 = scalar_lea.vmem %s3, %s437
      $region44: #{tpu_custom_call.1} parent=39 // pred_fallthru
        _
    $region40: #{tpu_custom_call.1} parent=5 // pred_fallthru
      _
  $region6: #{tpu_custom_call.1} parent=0 // loop_footer
    %s13 = sadd.s32 1, %s9
  $region7: #{tpu_custom_call.1} parent=0 // loop_footer_branch
    %8 = sbr.rel target = $region3
  $region8: #{tpu_custom_call.1} parent=0 // loop_exit
    _

</llo_original>
